<compile_context>
chip_gen: v5e
topology: v5e:2x2
jax: 0.10.0
libtpu: 0.0.40
codegen_flags: <defaults>
</compile_context>

<pallas_src>
import math

import jax
import jax.numpy as jnp
from jax.experimental import pallas as pl
from jax.experimental.pallas import tpu as pltpu


def _lane_pad(n):
    return max(((n + 127) // 128) * 128, 128)


def _sub_pad(n):
    return max(((n + 7) // 8) * 8, 8)


def _choose_t_tile(T, H, A):
    """Largest sequence tile whose t-dependent VMEM stays inside a ~12 MiB
    budget (leaves ample headroom on v7x's 64 MiB VMEM; generous on v5e/v6e)."""
    if T <= 8:
        return T
    # x is double-buffered; ~4 f32 (TT, A) temporaries (v, vu, e, slack).
    per_row_bytes = 4 * (2 * _lane_pad(H) + 4 * _lane_pad(A))
    budget = 12 * 1024 * 1024
    tt = max(8, min(T, budget // per_row_bytes, 1024))
    tt = (tt // 8) * 8
    return T if tt >= T else tt


def simple_att_layer_forward(x, w_omega, b_omega, u_omega, *, t_tile=None):
    B, T, H = x.shape
    A = w_omega.shape[1]

    x = x.astype(jnp.float32)
    w = w_omega.astype(jnp.float32)                  # (H, A)
    b = b_omega.reshape(1, A).astype(jnp.float32)    # (1, A)
    u = u_omega.reshape(A, 1).astype(jnp.float32)    # (A, 1)

    if t_tile is None:
        t_tile = _choose_t_tile(T, H, A)
    n_t = pl.cdiv(T, t_tile)
    needs_mask = (n_t * t_tile) != T

    def kernel(x_ref, w_ref, b_ref, u_ref, o_ref, m_sc, l_sc, acc_sc):
        ti = pl.program_id(1)

        @pl.when(ti == 0)
        def _():
            m_sc[...] = jnp.full_like(m_sc, -jnp.inf)
            l_sc[...] = jnp.zeros_like(l_sc)
            acc_sc[...] = jnp.zeros_like(acc_sc)

        xt = x_ref[0]                                      # (TT, H) f32

        if needs_mask:
            rows = ti * t_tile + jax.lax.broadcasted_iota(
                jnp.int32, (t_tile, 1), 0)
            valid = rows < T                                # (TT, 1)
            xt = jnp.where(valid, xt, 0.0)

        # v = tanh(x @ W + b)        -> (TT, A)   (MXU, f32 accumulate)
        v = jnp.tanh(
            jnp.dot(xt, w_ref[...], preferred_element_type=jnp.float32)
            + b_ref[...])
        # vu = v @ u                 -> (TT, 1)
        vu = jnp.dot(v, u_ref[...], preferred_element_type=jnp.float32)
        if needs_mask:
            vu = jnp.where(valid, vu, -jnp.inf)

        # --- online softmax over the sequence axis ---
        m_prev = m_sc[...]                                  # (1, 1)
        m_new = jnp.maximum(m_prev, jnp.max(vu, axis=0, keepdims=True))
        corr = jnp.exp(m_prev - m_new)                      # (1, 1)
        e = jnp.exp(vu - m_new)                             # (TT, 1)
        l_sc[...] = corr * l_sc[...] + jnp.sum(e, axis=0, keepdims=True)
        # weighted sum of x rows: (1, H) accumulator.  Plain VPU mul +
        # sublane reduce -> no cross-lane transpose needed.
        acc_sc[...] = corr * acc_sc[...] + jnp.sum(xt * e, axis=0,
                                                   keepdims=True)
        m_sc[...] = m_new

        @pl.when(ti == pl.num_programs(1) - 1)
        def _():
            inv_l = pl.reciprocal(l_sc[...], approx=True)   # EUP, ~free
            o_ref[0] = (acc_sc[...] * inv_l).astype(o_ref.dtype)

    # Explicit scoped-VMEM limit from the per-step footprint (with headroom),
    # capped at 48 MiB so it stays valid on v7x (64 MiB physical VMEM).
    per_step_bytes = 4 * (
        2 * _sub_pad(t_tile) * _lane_pad(H)     # x block (double-buffered)
        + 2 * _sub_pad(H) * _lane_pad(A)        # w_omega
        + 2 * _sub_pad(1) * _lane_pad(A)        # b_omega
        + 2 * _sub_pad(A) * _lane_pad(1)        # u_omega
        + 2 * _sub_pad(1) * _lane_pad(H)        # output block
        + 4 * _sub_pad(t_tile) * _lane_pad(A)   # v / vu / e temporaries
        + 3 * _sub_pad(1) * _lane_pad(H)        # m / l / acc scratch
    )
    vmem_limit = int(min(max(2 * per_step_bytes, 16 * 1024 * 1024),
                         48 * 1024 * 1024))

    out = pl.pallas_call(
        kernel,
        out_shape=jax.ShapeDtypeStruct((B, 1, H), jnp.float32),
        grid_spec=pltpu.PrefetchScalarGridSpec(
            num_scalar_prefetch=0,
            grid=(B, n_t),
            in_specs=[
                pl.BlockSpec((1, t_tile, H), lambda bi, ti: (bi, ti, 0)),  # x
                pl.BlockSpec((H, A), lambda bi, ti: (0, 0)),               # w
                pl.BlockSpec((1, A), lambda bi, ti: (0, 0)),               # b
                pl.BlockSpec((A, 1), lambda bi, ti: (0, 0)),               # u
            ],
            out_specs=pl.BlockSpec((1, 1, H), lambda bi, ti: (bi, 0, 0)),
            scratch_shapes=[
                pltpu.VMEM((1, 1), jnp.float32),   # running max
                pltpu.VMEM((1, 1), jnp.float32),   # running sum of exp
                pltpu.VMEM((1, H), jnp.float32),   # running weighted sum
            ],
        ),
        compiler_params=pltpu.CompilerParams(
            dimension_semantics=("parallel", "arbitrary"),
            vmem_limit_bytes=vmem_limit,
        ),
    )(x, w, b, u)
    return out.reshape(B, H)


def ref_forward(x, w_omega, b_omega, u_omega):
    """Pure-JAX reference mirroring the PyTorch SimpleAttLayer.forward."""
    v = jnp.tanh(jnp.einsum("bth,ha->bta", x, w_omega) + b_omega)
    vu = jnp.einsum("bta,ao->bto", v, u_omega)          # (B, T, 1)
    alphas = jax.nn.softmax(vu, axis=1)                 # softmax over T
    return jnp.sum(x * alphas, axis=1)                  # (B, H)


if __name__ == "__main__":
    B, T, H, A = 2, 16, 32, 128   # batch, seq, hidden_size(inputs), attention_size

    key = jax.random.PRNGKey(0)
    k_x, k_w, k_u = jax.random.split(key, 3)

    x = jax.random.normal(k_x, (B, T, H), dtype=jnp.float32)

    # Parameters matching the module's reset_parameters (xavier_uniform / zeros).
    lim_w = math.sqrt(6.0 / (H + A))
    w_omega = jax.random.uniform(k_w, (H, A), minval=-lim_w, maxval=lim_w,
                                 dtype=jnp.float32)
    b_omega = jnp.zeros((A,), dtype=jnp.float32)
    lim_u = math.sqrt(6.0 / (A + 1))
    u_omega = jax.random.uniform(k_u, (A, 1), minval=-lim_u, maxval=lim_u,
                                 dtype=jnp.float32)

    out = simple_att_layer_forward(x, w_omega, b_omega, u_omega)
    out = jax.block_until_ready(out)

    ref = ref_forward(x, w_omega, b_omega, u_omega)
    assert out.shape == (B, H)
    # approx reciprocal in the softmax finalize -> slightly loosened tolerance.
    assert jnp.allclose(out, ref, rtol=5e-3, atol=5e-3), "mismatch vs reference"

    print("KERNEL_OK")
</pallas_src>

<mosaic_0001>
module attributes {stable_mosaic.version = 11 : i64} {
  func.func @kernel(%arg0: i32, %arg1: i32, %arg2: memref<1x16x32xf32, #tpu.memory_space<vmem>>, %arg3: memref<32x128xf32, #tpu.memory_space<vmem>>, %arg4: memref<1x128xf32, #tpu.memory_space<vmem>>, %arg5: memref<128x1xf32, #tpu.memory_space<vmem>>, %arg6: memref<1x1x32xf32, #tpu.memory_space<vmem>>, %arg7: memref<1x1xf32, #tpu.memory_space<vmem>>, %arg8: memref<1x1xf32, #tpu.memory_space<vmem>>, %arg9: memref<1x32xf32, #tpu.memory_space<vmem>>) attributes {dimension_semantics = [#tpu.dimension_semantics<parallel>, #tpu.dimension_semantics<arbitrary>], iteration_bounds = array<i64: 2, 1>, scalar_prefetch = 0 : i64, scratch_operands = 3 : i64, tpu.core_type = #tpu.core_type<tc>, window_params = [{transform_indices = @transform_0, window_bounds = array<i64: 1, 16, 32>}, {pipeline_mode = #tpu.pipeline_mode<synchronous>, transform_indices = @transform_1, window_bounds = array<i64: 32, 128>}, {pipeline_mode = #tpu.pipeline_mode<synchronous>, transform_indices = @transform_2, window_bounds = array<i64: 1, 128>}, {pipeline_mode = #tpu.pipeline_mode<synchronous>, transform_indices = @transform_3, window_bounds = array<i64: 128, 1>}, {transform_indices = @transform_4, window_bounds = array<i64: 1, 1, 32>}]} {
    %c0_i32 = arith.constant 0 : i32
    %0 = arith.cmpi eq, %arg1, %c0_i32 : i32
    %1 = arith.extui %0 : i1 to i32
    %c0_i32_0 = arith.constant 0 : i32
    %2 = arith.cmpi ne, %1, %c0_i32_0 : i32
    scf.if %2 {
      %cst_27 = arith.constant 0xFF800000 : f32
      %41 = vector.broadcast %cst_27 : f32 to vector<1x1xf32>
      %c0_28 = arith.constant 0 : index
      %c0_29 = arith.constant 0 : index
      %42 = vector.load %arg7[%c0_28, %c0_29] : memref<1x1xf32, #tpu.memory_space<vmem>>, vector<1x1xf32>
      tpu.vector_store %arg7[%c0_28, %c0_29], %41 {strides = array<i32>} : memref<1x1xf32, #tpu.memory_space<vmem>>, vector<1x1xf32>,
      %cst_30 = arith.constant 0.000000e+00 : f32
      %43 = vector.broadcast %cst_30 : f32 to vector<1x1xf32>
      %c0_31 = arith.constant 0 : index
      %c0_32 = arith.constant 0 : index
      %44 = vector.load %arg8[%c0_31, %c0_32] : memref<1x1xf32, #tpu.memory_space<vmem>>, vector<1x1xf32>
      tpu.vector_store %arg8[%c0_31, %c0_32], %43 {strides = array<i32>} : memref<1x1xf32, #tpu.memory_space<vmem>>, vector<1x1xf32>,
      %cst_33 = arith.constant 0.000000e+00 : f32
      %45 = vector.broadcast %cst_33 : f32 to vector<1x32xf32>
      %c0_34 = arith.constant 0 : index
      %c0_35 = arith.constant 0 : index
      %46 = vector.load %arg9[%c0_34, %c0_35] : memref<1x32xf32, #tpu.memory_space<vmem>>, vector<1x32xf32>
      tpu.vector_store %arg9[%c0_34, %c0_35], %45 {strides = array<i32>} : memref<1x32xf32, #tpu.memory_space<vmem>>, vector<1x32xf32>,
    } else {
    }
    %c0 = arith.constant 0 : index
    %c0_1 = arith.constant 0 : index
    %c0_2 = arith.constant 0 : index
    %3 = vector.load %arg2[%c0, %c0_1, %c0_2] : memref<1x16x32xf32, #tpu.memory_space<vmem>>, vector<1x16x32xf32>
    %4 = vector.shape_cast %3 : vector<1x16x32xf32> to vector<16x32xf32>
    %c0_3 = arith.constant 0 : index
    %c0_4 = arith.constant 0 : index
    %5 = vector.load %arg3[%c0_3, %c0_4] : memref<32x128xf32, #tpu.memory_space<vmem>>, vector<32x128xf32>
    %cst = arith.constant dense<0.000000e+00> : vector<16x128xf32>
    %6 = tpu.matmul %4, %5, %cst {dimension_numbers = #tpu.dot_dimension_numbers<[1], [0], [0], [1], [0, 0, 1, 1], [], []>} : vector<16x32xf32>, vector<32x128xf32>, vector<16x128xf32> -> vector<16x128xf32>
    %c0_5 = arith.constant 0 : index
    %c0_6 = arith.constant 0 : index
    %7 = vector.load %arg4[%c0_5, %c0_6] : memref<1x128xf32, #tpu.memory_space<vmem>>, vector<1x128xf32>
    %8 = vector.broadcast %7 : vector<1x128xf32> to vector<16x128xf32>
    %9 = arith.addf %6, %8 : vector<16x128xf32>
    %10 = math.tanh %9 : vector<16x128xf32>
    %c0_7 = arith.constant 0 : index
    %c0_8 = arith.constant 0 : index
    %11 = vector.load %arg5[%c0_7, %c0_8] : memref<128x1xf32, #tpu.memory_space<vmem>>, vector<128x1xf32>
    %cst_9 = arith.constant dense<0.000000e+00> : vector<16x1xf32>
    %12 = tpu.matmul %10, %11, %cst_9 {dimension_numbers = #tpu.dot_dimension_numbers<[1], [0], [0], [1], [0, 0, 1, 1], [], []>} : vector<16x128xf32>, vector<128x1xf32>, vector<16x1xf32> -> vector<16x1xf32>
    %c0_10 = arith.constant 0 : index
    %c0_11 = arith.constant 0 : index
    %13 = vector.load %arg7[%c0_10, %c0_11] : memref<1x1xf32, #tpu.memory_space<vmem>>, vector<1x1xf32>
    %cst_12 = arith.constant dense<0xFF800000> : vector<1xf32>
    %14 = vector.multi_reduction <maximumf>, %12, %cst_12 [0] : vector<16x1xf32> to vector<1xf32>
    %15 = vector.shape_cast %14 : vector<1xf32> to vector<1x1xf32>
    %16 = arith.maximumf %13, %15 : vector<1x1xf32>
    %17 = arith.subf %13, %16 : vector<1x1xf32>
    %18 = math.exp %17 : vector<1x1xf32>
    %19 = vector.broadcast %16 : vector<1x1xf32> to vector<16x1xf32>
    %20 = arith.subf %12, %19 : vector<16x1xf32>
    %21 = math.exp %20 : vector<16x1xf32>
    %c0_13 = arith.constant 0 : index
    %c0_14 = arith.constant 0 : index
    %22 = vector.load %arg8[%c0_13, %c0_14] : memref<1x1xf32, #tpu.memory_space<vmem>>, vector<1x1xf32>
    %23 = arith.mulf %18, %22 : vector<1x1xf32>
    %cst_15 = arith.constant dense<0.000000e+00> : vector<1xf32>
    %24 = vector.multi_reduction <add>, %21, %cst_15 [0] : vector<16x1xf32> to vector<1xf32>
    %25 = vector.shape_cast %24 : vector<1xf32> to vector<1x1xf32>
    %26 = arith.addf %23, %25 : vector<1x1xf32>
    %c0_16 = arith.constant 0 : index
    %c0_17 = arith.constant 0 : index
    %27 = vector.load %arg8[%c0_16, %c0_17] : memref<1x1xf32, #tpu.memory_space<vmem>>, vector<1x1xf32>
    tpu.vector_store %arg8[%c0_16, %c0_17], %26 {strides = array<i32>} : memref<1x1xf32, #tpu.memory_space<vmem>>, vector<1x1xf32>,
    %c0_18 = arith.constant 0 : index
    %c0_19 = arith.constant 0 : index
    %28 = vector.load %arg9[%c0_18, %c0_19] : memref<1x32xf32, #tpu.memory_space<vmem>>, vector<1x32xf32>
    %29 = vector.broadcast %18 : vector<1x1xf32> to vector<1x32xf32>
    %30 = arith.mulf %29, %28 : vector<1x32xf32>
    %31 = vector.broadcast %21 : vector<16x1xf32> to vector<16x32xf32>
    %32 = arith.mulf %4, %31 : vector<16x32xf32>
    %cst_20 = arith.constant dense<0.000000e+00> : vector<32xf32>
    %33 = vector.multi_reduction <add>, %32, %cst_20 [0] : vector<16x32xf32> to vector<32xf32>
    %34 = vector.shape_cast %33 : vector<32xf32> to vector<1x32xf32>
    %35 = arith.addf %30, %34 : vector<1x32xf32>
    %c0_21 = arith.constant 0 : index
    %c0_22 = arith.constant 0 : index
    %36 = vector.load %arg9[%c0_21, %c0_22] : memref<1x32xf32, #tpu.memory_space<vmem>>, vector<1x32xf32>
    tpu.vector_store %arg9[%c0_21, %c0_22], %35 {strides = array<i32>} : memref<1x32xf32, #tpu.memory_space<vmem>>, vector<1x32xf32>,
    %c0_23 = arith.constant 0 : index
    %c0_24 = arith.constant 0 : index
    %37 = vector.load %arg7[%c0_23, %c0_24] : memref<1x1xf32, #tpu.memory_space<vmem>>, vector<1x1xf32>
    tpu.vector_store %arg7[%c0_23, %c0_24], %16 {strides = array<i32>} : memref<1x1xf32, #tpu.memory_space<vmem>>, vector<1x1xf32>,
    %c0_i32_25 = arith.constant 0 : i32
    %38 = arith.cmpi eq, %arg1, %c0_i32_25 : i32
    %39 = arith.extui %38 : i1 to i32
    %c0_i32_26 = arith.constant 0 : i32
    %40 = arith.cmpi ne, %39, %c0_i32_26 : i32
    scf.if %40 {
      %c0_27 = arith.constant 0 : index
      %c0_28 = arith.constant 0 : index
      %41 = vector.load %arg8[%c0_27, %c0_28] : memref<1x1xf32, #tpu.memory_space<vmem>>, vector<1x1xf32>
      %42 = tpu.reciprocal %41 {approx = true} : vector<1x1xf32> -> vector<1x1xf32>
      %c0_29 = arith.constant 0 : index
      %c0_30 = arith.constant 0 : index
      %43 = vector.load %arg9[%c0_29, %c0_30] : memref<1x32xf32, #tpu.memory_space<vmem>>, vector<1x32xf32>
      %44 = vector.broadcast %42 : vector<1x1xf32> to vector<1x32xf32>
      %45 = arith.mulf %43, %44 : vector<1x32xf32>
      %c0_31 = arith.constant 0 : index
      %c0_32 = arith.constant 0 : index
      %c0_33 = arith.constant 0 : index
      %46 = vector.load %arg6[%c0_31, %c0_32, %c0_33] : memref<1x1x32xf32, #tpu.memory_space<vmem>>, vector<1x1x32xf32>
      %47 = vector.shape_cast %46 : vector<1x1x32xf32> to vector<1x32xf32>
      %48 = vector.shape_cast %45 : vector<1x32xf32> to vector<1x1x32xf32>
      tpu.vector_store %arg6[%c0_31, %c0_32, %c0_33], %48 {strides = array<i32>} : memref<1x1x32xf32, #tpu.memory_space<vmem>>, vector<1x1x32xf32>,
    } else {
    }
    return
  }
  func.func @transform_0(%arg0: i32, %arg1: i32) -> (i32, i32, i32) {
    %c0_i32 = arith.constant 0 : i32
    %c0_i32_0 = arith.constant 0 : i32
    return %arg0, %arg1, %c0_i32 : i32, i32, i32
  }
  func.func @transform_1(%arg0: i32, %arg1: i32) -> (i32, i32) {
    %c0_i32 = arith.constant 0 : i32
    %c0_i32_0 = arith.constant 0 : i32
    %c0_i32_1 = arith.constant 0 : i32
    return %c0_i32, %c0_i32_0 : i32, i32
  }
  func.func @transform_2(%arg0: i32, %arg1: i32) -> (i32, i32) {
    %c0_i32 = arith.constant 0 : i32
    %c0_i32_0 = arith.constant 0 : i32
    %c0_i32_1 = arith.constant 0 : i32
    return %c0_i32, %c0_i32_0 : i32, i32
  }
  func.func @transform_3(%arg0: i32, %arg1: i32) -> (i32, i32) {
    %c0_i32 = arith.constant 0 : i32
    %c0_i32_0 = arith.constant 0 : i32
    %c0_i32_1 = arith.constant 0 : i32
    return %c0_i32, %c0_i32_0 : i32, i32
  }
  func.func @transform_4(%arg0: i32, %arg1: i32) -> (i32, i32, i32) {
    %c0_i32 = arith.constant 0 : i32
    %c0_i32_0 = arith.constant 0 : i32
    %c0_i32_1 = arith.constant 0 : i32
    return %arg0, %c0_i32, %c0_i32_0 : i32, i32, i32
  }
}

</mosaic_0001>

<llo_original>
// kernel: tpu_custom_call.1
$region0: #{tpu_custom_call.1}
  #allocation0 [shape = 'u32[]', space=smem, size = 0x4, offset = 0x4, fixed_abs, tag = 'smem constant byte address 0x4 - core index']
  #allocation1 [shape = 'u32[72,128]{1,0:T(1,128)}', space=vmem, size = 0x9000, scoped, tag = 'internal scratch']
  #allocation2 [shape = 'f32[1,1]{1,0:T(1,128)}', space=vmem, size = 0x200, scoped, tag = 'scratch operand']
  #allocation3 [shape = 'f32[1,1]{1,0:T(1,128)}', space=vmem, size = 0x200, scoped, tag = 'scratch operand']
  #allocation4 [shape = 'f32[1,32]{1,0:T(1,128)}', space=vmem, size = 0x200, scoped, tag = 'scratch operand']
  %s0 = inlined_call_operand.vmem [shape: f32[2,16,32], index: 0, kind: input, shape index: {}]
  %s1 = inlined_call_operand.vmem [shape: f32[32,128], index: 1, kind: input, shape index: {}]
  %s2 = inlined_call_operand.vmem [shape: f32[1,128], index: 2, kind: input, shape index: {}]
  %s3 = inlined_call_operand.vmem [shape: f32[128,1], index: 3, kind: input, shape index: {}]
  %s4 = inlined_call_operand.hbm [shape: f32[2,1,32], index: 4, kind: output, shape index: {}]
  %s5 = sld [smem:[#allocation0]]
  $region57: #{tpu_custom_call.1} parent=0
    _
  %s7 = ssub.s32 1, %s5
  %s8 = scalar_select 0, %s7, %s5
  $region1: #{tpu_custom_call.1} parent=0
    #allocation5 [shape = 'u8[1024]{0}', space=vmem, size = 0x400, scoped, tag = 'output window, operand 0']
    #allocation6 [shape = 's32[2]{0}', space=sflag, size = 0x8, scoped, tag = 'scoped memory for tpu_custom_call.1']
    %9 = vsyncpa [#allocation6], 0
    %s10 = scalar_lea.sflag [#allocation6], 1
    %11 = vsyncpa %s10, 0
    loop: start=0, step=1, limit=4
    $region2: #{tpu_custom_call.1} parent=1 // loop_pre_header
      _
    $region3: #{tpu_custom_call.1} parent=1 // loop_header
      %s13 = sphi 0, %s17
      %p14 = scmp.ge.s32.totalorder %s13, 4
      %s20 = sphi 0, %s32
      %s21 = sphi 0, %s28
      %s22 = sphi 0, %s20
      %s23 = sphi 0, %s21
      %s24 = sphi 0, %s22
      %s25 = sphi 0, %s23
      %s37 = sphi 0, %s39
      %s40 = sphi 0, %s37
      %s41 = sphi 0, %s40
      %s57 = sphi 0, %s41
      %s61 = sphi 0, %s61
      %s63 = sphi 0, %s61
      %s64 = sphi 0, %s63
      %s78 = sphi 0, %s64
      %s82 = sphi 0, %s82
      %s84 = sphi 0, %s82
      %s85 = sphi 0, %s84
      %s99 = sphi 0, %s85
      %s103 = sphi 0, %s103
      %s105 = sphi 0, %s103
      %s106 = sphi 0, %s105
      %s120 = sphi 0, %s106
      %s126 = sphi 0, %s128
      %s129 = sphi 0, %s126
      %s130 = sphi 0, %s129
      %s146 = sphi 0, %s130
    $region4: #{tpu_custom_call.1} parent=1 // loop_header_branch
      %16 = sbr.rel (%p14) target = $region8
    $region5: #{tpu_custom_call.1} parent=1 // loop_body
      %s18 = ssub.s32 %s13, 1
      %s19 = ssub.s32 %s13, 2
      %s26 = sadd.s32 1, %s21
      %p27 = scmp.ge.s32.totalorder %s26, 1
      %s28 = scalar_select %p27, 0, %s26
      %s29 = sadd.s32 1, %s20
      %s30 = scalar_select %p27, %s29, %s20
      %p31 = scmp.ge.s32.totalorder %s30, 2
      %s32 = scalar_select %p31, 0, %s30
      %s33 = ssub.s32 %s20, %s32
      %s34 = ssub.s32 %s21, %s28
      %s35 = sor.u32 %s33, %s34
      %p36 = scmp.eq.s32.totalorder %s35, 0
      %s38 = sadd.s32 %s37, 1
      %s39 = scalar_select %p36, %s37, %s38
      %p42 = pneg %p36
      %p43 = scmp.eq.s32.totalorder %s13, 1
      %p44 = por %p42, %p43
      %p45 = scmp.ne.s32.totalorder %s37, %s40
      %p46 = scmp.eq.s32.totalorder %s13, 0
      %p47 = por %p45, %p46
      %p48 = scmp.ne.s32.totalorder %s37, %s40
      %p49 = scmp.eq.s32.totalorder %s18, 1
      %p50 = por %p48, %p49
      %p51 = scmp.ne.s32.totalorder %s40, %s41
      %p52 = scmp.eq.s32.totalorder %s18, 0
      %p53 = por %p51, %p52
      %p54 = scmp.ne.s32.totalorder %s40, %s41
      %p55 = scmp.eq.s32.totalorder %s19, 1
      %p56 = por %p54, %p55
      %p58 = scmp.ne.s32.totalorder %s41, %s57
      %p59 = scmp.eq.s32.totalorder %s19, 0
      %p60 = por %p58, %p59
      %s62 = sadd.s32 %s61, 1
      %p65 = scmp.eq.s32.totalorder %s13, 1
      %p66 = scmp.ne.s32.totalorder %s61, %s63
      %p67 = scmp.eq.s32.totalorder %s13, 0
      %p68 = por %p66, %p67
      %p69 = scmp.ne.s32.totalorder %s61, %s63
      %p70 = scmp.eq.s32.totalorder %s18, 1
      %p71 = por %p69, %p70
      %p72 = scmp.ne.s32.totalorder %s63, %s64
      %p73 = scmp.eq.s32.totalorder %s18, 0
      %p74 = por %p72, %p73
      %p75 = scmp.ne.s32.totalorder %s63, %s64
      %p76 = scmp.eq.s32.totalorder %s19, 1
      %p77 = por %p75, %p76
      %p79 = scmp.ne.s32.totalorder %s64, %s78
      %p80 = scmp.eq.s32.totalorder %s19, 0
      %p81 = por %p79, %p80
      %s83 = sadd.s32 %s82, 1
      %p86 = scmp.eq.s32.totalorder %s13, 1
      %p87 = scmp.ne.s32.totalorder %s82, %s84
      %p88 = scmp.eq.s32.totalorder %s13, 0
      %p89 = por %p87, %p88
      %p90 = scmp.ne.s32.totalorder %s82, %s84
      %p91 = scmp.eq.s32.totalorder %s18, 1
      %p92 = por %p90, %p91
      %p93 = scmp.ne.s32.totalorder %s84, %s85
      %p94 = scmp.eq.s32.totalorder %s18, 0
      %p95 = por %p93, %p94
      %p96 = scmp.ne.s32.totalorder %s84, %s85
      %p97 = scmp.eq.s32.totalorder %s19, 1
      %p98 = por %p96, %p97
      %p100 = scmp.ne.s32.totalorder %s85, %s99
      %p101 = scmp.eq.s32.totalorder %s19, 0
      %p102 = por %p100, %p101
      %s104 = sadd.s32 %s103, 1
      %p107 = scmp.eq.s32.totalorder %s13, 1
      %p108 = scmp.ne.s32.totalorder %s103, %s105
      %p109 = scmp.eq.s32.totalorder %s13, 0
      %p110 = por %p108, %p109
      %p111 = scmp.ne.s32.totalorder %s103, %s105
      %p112 = scmp.eq.s32.totalorder %s18, 1
      %p113 = por %p111, %p112
      %p114 = scmp.ne.s32.totalorder %s105, %s106
      %p115 = scmp.eq.s32.totalorder %s18, 0
      %p116 = por %p114, %p115
      %p117 = scmp.ne.s32.totalorder %s105, %s106
      %p118 = scmp.eq.s32.totalorder %s19, 1
      %p119 = por %p117, %p118
      %p121 = scmp.ne.s32.totalorder %s106, %s120
      %p122 = scmp.eq.s32.totalorder %s19, 0
      %p123 = por %p121, %p122
      %s124 = ssub.s32 %s20, %s32
      %p125 = scmp.eq.s32.totalorder %s124, 0
      %s127 = sadd.s32 %s126, 1
      %s128 = scalar_select %p125, %s126, %s127
      %p131 = pneg %p125
      %p132 = scmp.eq.s32.totalorder %s13, 1
      %p133 = por %p131, %p132
      %p134 = scmp.ne.s32.totalorder %s126, %s129
      %p135 = scmp.eq.s32.totalorder %s13, 0
      %p136 = por %p134, %p135
      %p137 = scmp.ne.s32.totalorder %s126, %s129
      %p138 = scmp.eq.s32.totalorder %s18, 1
      %p139 = por %p137, %p138
      %p140 = scmp.ne.s32.totalorder %s129, %s130
      %p141 = scmp.eq.s32.totalorder %s18, 0
      %p142 = por %p140, %p141
      %p143 = scmp.ne.s32.totalorder %s129, %s130
      %p144 = scmp.eq.s32.totalorder %s19, 1
      %p145 = por %p143, %p144
      %p147 = scmp.ne.s32.totalorder %s130, %s146
      %p148 = scmp.eq.s32.totalorder %s19, 0
      %p149 = por %p147, %p148
      %p150 = scmp.le.s32.totalorder 1, %s13
      %p151 = scmp.lt.s32.totalorder %s13, 3
      %p152 = pnand %p150, %p151
      %p153 = pneg %p152
      // Predicated region
      $region9: #{tpu_custom_call.1} parent=5 // pred_check
        _
      $region10: #{tpu_custom_call.1} parent=5 // pred_check_branch
        %155 = sbr.rel (%p152) target = $region12
      $region11: #{tpu_custom_call.1} parent=5 // pred_region
        %s156 = ssub.s32 %s13, 1
        // Predicated region
        $region13: #{tpu_custom_call.1} parent=11 // pred_check
          %p157 = pneg %p74
        $region14: #{tpu_custom_call.1} parent=11 // pred_check_branch
          %159 = sbr.rel (%p157) target = $region16
        $region15: #{tpu_custom_call.1} parent=11 // pred_region
          _
        $region16: #{tpu_custom_call.1} parent=11 // pred_fallthru
          _
        // Predicated region
        $region17: #{tpu_custom_call.1} parent=11 // pred_check
          %p160 = pneg %p95
        $region18: #{tpu_custom_call.1} parent=11 // pred_check_branch
          %162 = sbr.rel (%p160) target = $region20
        $region19: #{tpu_custom_call.1} parent=11 // pred_region
          _
        $region20: #{tpu_custom_call.1} parent=11 // pred_fallthru
          _
        // Predicated region
        $region21: #{tpu_custom_call.1} parent=11 // pred_check
          %p163 = pneg %p116
        $region22: #{tpu_custom_call.1} parent=11 // pred_check_branch
          %165 = sbr.rel (%p163) target = $region24
        $region23: #{tpu_custom_call.1} parent=11 // pred_region
          _
        $region24: #{tpu_custom_call.1} parent=11 // pred_fallthru
          _
      $region12: #{tpu_custom_call.1} parent=5 // pred_fallthru
        _
      %p166 = scmp.lt.s32.totalorder %s13, 2
      // Predicated region
      $region25: #{tpu_custom_call.1} parent=5 // pred_check
        %p167 = pneg %p166
      $region26: #{tpu_custom_call.1} parent=5 // pred_check_branch
        %169 = sbr.rel (%p167) target = $region28
      $region27: #{tpu_custom_call.1} parent=5 // pred_region
        // Predicated region
        $region29: #{tpu_custom_call.1} parent=27 // pred_check
          %p170 = pneg %p47
        $region30: #{tpu_custom_call.1} parent=27 // pred_check_branch
          %172 = sbr.rel (%p170) target = $region32
        $region31: #{tpu_custom_call.1} parent=27 // pred_region
          %s173 = smul.u32 2, %s21
          %p174 = scmp.lt.s32.totalorder %s20, 1
          %s175 = scalar_select %p174, %s20, 1
          %p176 = scmp.lt.s32.totalorder %s173, 1
          %s177 = scalar_select %p176, %s173, 1
          %s178 = smul.addr %s175, 2
          %s179 = sadd.s32 %s177, %s178
          %s180 = smul.addr %s179, 8
          %s181 = scalar_lea.vmem %s0, %s180
          %s182 = smul.u32 2, %s21
        $region32: #{tpu_custom_call.1} parent=27 // pred_fallthru
          _
      $region28: #{tpu_custom_call.1} parent=5 // pred_fallthru
        _
      %p183 = scmp.le.s32.totalorder 1, %s13
      %p184 = scmp.lt.s32.totalorder %s13, 3
      %p185 = pnand %p183, %p184
      %p186 = pneg %p185
      // Predicated region
      $region33: #{tpu_custom_call.1} parent=5 // pred_check
        _
      $region34: #{tpu_custom_call.1} parent=5 // pred_check_branch
        %188 = sbr.rel (%p185) target = $region36
      $region35: #{tpu_custom_call.1} parent=5 // pred_region
        %s189 = ssub.s32 %s13, 1
        %s190 = smul.u32 2, %s23
        %p191 = scmp.lt.s32.totalorder %s22, 1
        %s192 = scalar_select %p191, %s22, 1
        %p193 = scmp.lt.s32.totalorder %s190, 1
        %s194 = scalar_select %p193, %s190, 1
        %s195 = smul.addr %s192, 2
        %s196 = sadd.s32 %s194, %s195
        %s197 = smul.addr %s196, 8
        %s198 = scalar_lea.vmem %s0, %s197
        %p199 = pneg %p53
        %p200 = pneg %p50
        %p201 = pneg %p74
        %p202 = pneg %p71
        %p203 = pneg %p95
        %p204 = pneg %p92
        %p205 = pneg %p116
        %p206 = pneg %p113
        %p207 = pneg %p142
        %p208 = pneg %p139
        %s209 = sand.u32 %s129, 1
        %s210 = scalar_lea.sflag [#allocation6], %s209
        %s211 = sand.u32 %s129, 1
        %s212 = scalar_lea.vmem [#allocation5], %s211
        %s213 = smul.u32 2, %s23
        %p214 = scmp.lt.s32.totalorder %s22, 1
        %s215 = scalar_select %p214, %s22, 1
        %p216 = scmp.lt.s32.totalorder %s213, 1
        %s217 = scalar_select %p216, %s213, 1
        %s218 = smul.addr %s215, 2
        %s219 = sadd.s32 %s217, %s218
        %s220 = smul.addr %s219, 8
        %s221 = scalar_lea.vmem %s0, %s220
        %s222 = smul.u32 2, %s23
        %p223 = scmp.eq.s32.totalorder %s23, 0
        // Predicated region
        $region37: #{tpu_custom_call.1} parent=35 // pred_check
          %p224 = pneg %p223
        $region38: #{tpu_custom_call.1} parent=35 // pred_check_branch
          %226 = sbr.rel (%p224) target = $region40
        $region39: #{tpu_custom_call.1} parent=35 // pred_region
          %vm227 = vcmask 0
          %228 = vst.msk [vmem:[#allocation2] sm:$0x1] %vm227, -inf
          %229 = vst.msk [vmem:[#allocation3] sm:$0x1] %vm227, 0.0
          %vm230 = vcmask 253952
          %231 = vst.msk [vmem:[#allocation4] sm:$0x1] %vm230, 0.0
        $region40: #{tpu_custom_call.1} parent=35 // pred_fallthru
          _
        %v232 = vld [vmem:[%s221] sm:$0xff]
        %v233 = vld [vmem:[%s221 + $0x8] sm:$0xff]
        %v234 = vld [vmem:[%s1] sm:$0xff]
        %v235 = vld [vmem:[%s1 + $0x8] sm:$0xff]
        %v236 = vld [vmem:[%s1 + $0x10] sm:$0xff]
        %v237 = vld [vmem:[%s1 + $0x18] sm:$0xff]
        %v238 = vld [vmem:[%s2] sm:$0x1]
        %v240 = vperm.slane %v238, 0
        %vm242 = vcmask 261120
        %v244 = vsel %vm242, %v232, 0
        %v247 = vsel %vm242, %v233, 0
        %249 = vmatpush.msra.mxu0 0.0
        %250 = vmatpush.msra.mxu0 0.0
        %251 = vmatpush.msra.mxu0 0.0
        %252 = vmatpush.msra.mxu0 0.0
        %253 = vmatpush.msra.mxu0 0.0
        %254 = vmatpush.msra.mxu0 0.0
        %255 = vmatpush.msra.mxu0 0.0
        %256 = vmatpush.msra.mxu0 0.0
        %257 = vmatpush.msra.mxu0 0.0
        %258 = vmatpush.msra.mxu0 0.0
        %259 = vmatpush.msra.mxu0 0.0
        %260 = vmatpush.msra.mxu0 0.0
        %261 = vmatpush.msra.mxu0 %v237
        %262 = vmatpush.msra.mxu0 %v236
        %263 = vmatpush.msra.mxu0 %v235
        %264 = vmatpush.msra.mxu0 %v234
        %265 = vmatmul.f32.gmra.mxu0 %v244
        %v266 = vpop.f32.mrf.mxu0
        %v267 = vadd.f32 %v240, %v266
        %268 = vmatmul.f32.gmra.mxu0 %v247
        %v269 = vpop.f32.mrf.mxu0
        %v270 = vadd.f32 %v240, %v269
        %271 = vdwg.mxu0
        %v272 = vtanh.pop %v267
        %v273 = vtanh.pop %v270
        %v274 = vld [vmem:[%s3] sm:$0xff]
        %v275 = vld [vmem:[%s3 + $0x8] sm:$0xff]
        %v276 = vld [vmem:[%s3 + $0x10] sm:$0xff]
        %v277 = vld [vmem:[%s3 + $0x18] sm:$0xff]
        %v278 = vld [vmem:[%s3 + $0x20] sm:$0xff]
        %v279 = vld [vmem:[%s3 + $0x28] sm:$0xff]
        %v280 = vld [vmem:[%s3 + $0x30] sm:$0xff]
        %v281 = vld [vmem:[%s3 + $0x38] sm:$0xff]
        %v282 = vld [vmem:[%s3 + $0x40] sm:$0xff]
        %v283 = vld [vmem:[%s3 + $0x48] sm:$0xff]
        %v284 = vld [vmem:[%s3 + $0x50] sm:$0xff]
        %v285 = vld [vmem:[%s3 + $0x58] sm:$0xff]
        %v286 = vld [vmem:[%s3 + $0x60] sm:$0xff]
        %v287 = vld [vmem:[%s3 + $0x68] sm:$0xff]
        %v288 = vld [vmem:[%s3 + $0x70] sm:$0xff]
        %v289 = vld [vmem:[%s3 + $0x78] sm:$0xff]
        %290 = vmatpush.msra.mxu0 %v289
        %291 = vmatpush.msra.mxu0 %v288
        %292 = vmatpush.msra.mxu0 %v287
        %293 = vmatpush.msra.mxu0 %v286
        %294 = vmatpush.msra.mxu0 %v285
        %295 = vmatpush.msra.mxu0 %v284
        %296 = vmatpush.msra.mxu0 %v283
        %297 = vmatpush.msra.mxu0 %v282
        %298 = vmatpush.msra.mxu0 %v281
        %299 = vmatpush.msra.mxu0 %v280
        %300 = vmatpush.msra.mxu0 %v279
        %301 = vmatpush.msra.mxu0 %v278
        %302 = vmatpush.msra.mxu0 %v277
        %303 = vmatpush.msra.mxu0 %v276
        %304 = vmatpush.msra.mxu0 %v275
        %305 = vmatpush.msra.mxu0 %v274
        %306 = vmatmul.f32.gmra.mxu0 %v272
        %v307 = vpop.f32.mrf.mxu0
        %v308 = vadd.f32 0.0, %v307
        %309 = vmatmul.f32.gmra.mxu0 %v273
        %v310 = vpop.f32.mrf.mxu0
        %v311 = vadd.f32 0.0, %v310
        %312 = vdwg.mxu0
        %v313 = vld [vmem:[#allocation2] sm:$0x1]
        %vm314 = vcmask 7168
        %v315 = vsel %vm314, %v308, -inf
        %v316 = vsel %vm314, %v311, -inf
        %v317 = vmax.f32 %v315, %v316
        %v318 = vrot.slane %v317, 4
        %v319 = vmax.f32 %v317, %v318
        %v320 = vrot.slane %v319, 2
        %v321 = vmax.f32 %v319, %v320
        %v322 = vrot.slane %v321, 1
        %v323 = vmax.f32 %v321, %v322
        %v324 = vmax.f32 %v313, %v323
        %v325 = vsub.f32 %v313, %v324
        %v326 = vmul.f32 %v325, 1.442695
        %v327 = vpow.pop %v326
        %v329 = vperm.slane %v324, 0
        %v331 = vsub.f32 %v308, %v329
        %v332 = vsub.f32 %v311, %v329
        %v333 = vmul.f32 %v331, 1.442695
        %v334 = vpow.pop %v333
        %v335 = vmul.f32 %v332, 1.442695
        %v336 = vpow.pop %v335
        %v337 = vld [vmem:[#allocation3] sm:$0x1]
        %v338 = vmul.f32 %v327, %v337
        %v339 = vsel %vm314, %v334, 0.0
        %v340 = vsel %vm314, %v336, 0.0
        %v341 = vadd.f32 %v339, %v340
        %v342 = vrot.slane %v341, 4
        %v343 = vadd.f32 %v341, %v342
        %v344 = vrot.slane %v343, 2
        %v345 = vadd.f32 %v343, %v344
        %v346 = vrot.slane %v345, 1
        %v347 = vadd.f32 %v345, %v346
        %v348 = vadd.f32 %v338, %v347
        %vm349 = vcmask 0
        %350 = vst.msk [vmem:[#allocation3] sm:$0x1] %vm349, %v348
        %v351 = vld [vmem:[#allocation4] sm:$0x1]
        %353 = vset.pattern.permute.xlu0 0
        %354 = vperm.xlu0 %353, %v327
        %v355 = vpop.permute.xlu0 %354
        %v357 = vperm.slane %v355, 0
        %v358 = vmul.f32 %v357, %v351
        %360 = vset.pattern.permute.xlu0 0
        %361 = vperm.xlu0 %360, %v334
        %v362 = vpop.permute.xlu0 %361
        %365 = vset.pattern.permute.xlu0 0
        %366 = vperm.xlu0 %365, %v336
        %v367 = vpop.permute.xlu0 %366
        %v369 = vmul.f32 %v232, %v362
        %v370 = vmul.f32 %v233, %v367
        %v371 = vsel %vm242, %v369, 0.0
        %v372 = vsel %vm242, %v370, 0.0
        %v373 = vadd.f32 %v371, %v372
        %v374 = vrot.slane %v373, 4
        %v375 = vadd.f32 %v373, %v374
        %v376 = vrot.slane %v375, 2
        %v377 = vadd.f32 %v375, %v376
        %v378 = vrot.slane %v377, 1
        %v379 = vadd.f32 %v377, %v378
        %v380 = vadd.f32 %v358, %v379
        %vm381 = vcmask 253952
        %382 = vst.msk [vmem:[#allocation4] sm:$0x1] %vm381, %v380
        %383 = vst.msk [vmem:[#allocation2] sm:$0x1] %vm349, %v324
        // Predicated region
        $region41: #{tpu_custom_call.1} parent=35 // pred_check
          %p384 = pneg %p223
        $region42: #{tpu_custom_call.1} parent=35 // pred_check_branch
          %386 = sbr.rel (%p384) target = $region44
        $region43: #{tpu_custom_call.1} parent=35 // pred_region
          %v387 = vld [vmem:[#allocation3] sm:$0x1]
          %v388 = vrcp.pop %v387
          %v389 = vld [vmem:[#allocation4] sm:$0x1]
          %391 = vset.pattern.permute.xlu0 0
          %392 = vperm.xlu0 %391, %v388
          %v393 = vpop.permute.xlu0 %392
          %v395 = vperm.slane %v393, 0
          %v396 = vmul.f32 %v389, %v395
          %397 = vst.msk [vmem:[%s212] sm:$0x1] %vm381, %v396
        $region44: #{tpu_custom_call.1} parent=35 // pred_fallthru
          _
        %s398 = sand.u32 %s129, 1
        %s399 = scalar_lea.sflag [#allocation6], %s398
        %s400 = sand.u32 %s129, 1
        %s401 = scalar_lea.vmem [#allocation5], %s400
        // Predicated region
        $region45: #{tpu_custom_call.1} parent=35 // pred_check
          %p402 = pneg %p139
        $region46: #{tpu_custom_call.1} parent=35 // pred_check_branch
          %404 = sbr.rel (%p402) target = $region48
        $region47: #{tpu_custom_call.1} parent=35 // pred_region
          %406 = vsyncadd %s399, 0
          %s407 = scalar_lea.hbm %s4, %s22
          %s409 = sshll.u32 %s401, 4
          %s410 = int_to_ptr.vmem [resolvable:$true] %s409
          %s411 = sshll.u32 %s407, 4
          %s412 = int_to_ptr.hbm [resolvable:$true] %s411
          %414 = dma.vmem_to_hbm [thread:$0]  %s410, 16, %s412, %s399
        $region48: #{tpu_custom_call.1} parent=35 // pred_fallthru
          _
      $region36: #{tpu_custom_call.1} parent=5 // pred_fallthru
        _
      %p415 = scmp.le.s32.totalorder 2, %s13
      // Predicated region
      $region49: #{tpu_custom_call.1} parent=5 // pred_check
        %p416 = pneg %p415
      $region50: #{tpu_custom_call.1} parent=5 // pred_check_branch
        %418 = sbr.rel (%p416) target = $region52
      $region51: #{tpu_custom_call.1} parent=5 // pred_region
        %s419 = ssub.s32 %s13, 2
        // Predicated region
        $region53: #{tpu_custom_call.1} parent=51 // pred_check
          %p420 = pneg %p145
        $region54: #{tpu_custom_call.1} parent=51 // pred_check_branch
          %422 = sbr.rel (%p420) target = $region56
        $region55: #{tpu_custom_call.1} parent=51 // pred_region
          %s423 = sand.u32 %s130, 1
          %s424 = scalar_lea.sflag [#allocation6], %s423
          %s425 = sand.u32 %s130, 1
          %s426 = scalar_lea.vmem [#allocation5], %s425
          %428 = dma.done %s424, 16
        $region56: #{tpu_custom_call.1} parent=51 // pred_fallthru
          _
      $region52: #{tpu_custom_call.1} parent=5 // pred_fallthru
        _
    $region6: #{tpu_custom_call.1} parent=1 // loop_footer
      %s17 = sadd.s32 1, %s13
    $region7: #{tpu_custom_call.1} parent=1 // loop_footer_branch
      %12 = sbr.rel target = $region3
    $region8: #{tpu_custom_call.1} parent=1 // loop_exit
      _
    %429 = vsyncpa [#allocation6], 1
    %s430 = scalar_lea.sflag [#allocation6], 1
    %431 = vsyncpa %s430, 1

</llo_original>
